<compile_context>
chip_gen: v5e
topology: v5e:2x2
jax: 0.10.0
libtpu: 0.0.40
codegen_flags: <defaults>
</compile_context>

<pallas_src>
import jax
import jax.numpy as jnp
from jax.experimental import pallas as pl
from jax.experimental.pallas import tpu as pltpu


def rnn_kernel(x_ref, h0_ref, wih_ref, whhT_ref, b_ref, woutT_ref, bout_ref,
               outs_ref, hfin_ref):
    B, T = x_ref.shape

    # Hoist all weight loads out of the unrolled loop.
    wih = wih_ref[...]       # (1, H)   == W_ih^T (input_size = 1)
    whhT = whhT_ref[...]     # (H, H)   == W_hh^T
    b = b_ref[...]           # (1, H)   == b_ih + b_hh
    woutT = woutT_ref[...]   # (H, 1)   == W_out^T
    bout = bout_ref[0]       # scalar (SMEM)

    # Precompute every per-step input-projection addend BEFORE the recurrence:
    # these are independent broadcasts, so they hide under the MXU/tanh chain
    # instead of extending it.
    xb = [x_ref[:, t:t + 1] * wih + b for t in range(T)]     # T x (B, H)

    h = h0_ref[...]          # (B, H), stays in vregs across the whole loop
    hs = []

    # Fully-unrolled static time loop (T small & static): each step is a
    # single MXU push + add + tanh on the serial chain.
    for t in range(T):
        h = jnp.tanh(xb[t] + jnp.dot(h, whhT,
                                     preferred_element_type=jnp.float32))
        hs.append(h)

    hfin_ref[...] = h

    # Fused output Linear over all timesteps: ONE MXU dot instead of T tiny
    # ones, bias added once, and a single lane-dense (B, T) store.
    hs_all = jnp.concatenate(hs, axis=0)                     # (T*B, H), t-major
    y = jnp.dot(hs_all, woutT,
                preferred_element_type=jnp.float32)          # (T*B, 1)
    outs_ref[...] = jnp.concatenate(
        [y[t * B:(t + 1) * B, :] for t in range(T)], axis=1) + bout  # (B, T)


def prepare_params(params):
    """One-time layout prep (keeps transposes/casts off the per-call path)."""
    H = params["w_hh"].shape[0]
    return {
        "wih_row": params["w_ih"].reshape(1, H).astype(jnp.float32),     # W_ih^T
        "whhT": params["w_hh"].T.astype(jnp.float32),                    # (H, H)
        "b": (params["b_ih"] + params["b_hh"]).reshape(1, H).astype(jnp.float32),
        "woutT": params["w_out"].reshape(H, 1).astype(jnp.float32),      # W_out^T
        "bout": params["b_out"].reshape(1).astype(jnp.float32),          # (1,)
    }


def rnn_forward(x, h_state, prep):
    """x: (B, T, 1) f32, h_state: (1, B, H) f32 -> ((B, T, 1), (1, B, H))."""
    B, T, _ = x.shape
    H = prep["whhT"].shape[0]

    x_bt = x[..., 0].astype(jnp.float32)        # (B, T)
    h0 = h_state[0].astype(jnp.float32)         # (B, H)

    vmem = pl.BlockSpec(memory_space=pltpu.MemorySpace.VMEM)
    smem = pl.BlockSpec(memory_space=pltpu.MemorySpace.SMEM)

    outs_bt, h_final = pl.pallas_call(
        rnn_kernel,
        out_shape=(jax.ShapeDtypeStruct((B, T), jnp.float32),
                   jax.ShapeDtypeStruct((B, H), jnp.float32)),
        in_specs=[vmem, vmem, vmem, vmem, vmem, vmem, smem],
        out_specs=(vmem, vmem),
        input_output_aliases={1: 1},            # h0 buffer reused for h_final
    )(x_bt, h0, prep["wih_row"], prep["whhT"], prep["b"],
      prep["woutT"], prep["bout"])

    outs = outs_bt[:, :, None]                  # (B, T, 1), batch_first
    return outs, h_final[None]                  # (1, B, H)


def rnn_reference(x, h_state, p):
    """Pure-JAX reference matching torch semantics."""
    h0 = h_state[0]

    def step(h, x_t):
        h_new = jnp.tanh(x_t @ p["w_ih"].T + p["b_ih"] + h @ p["w_hh"].T + p["b_hh"])
        y = h_new @ p["w_out"].T + p["b_out"]
        return h_new, y

    h_final, ys = jax.lax.scan(step, h0, jnp.transpose(x, (1, 0, 2)))
    return jnp.transpose(ys, (1, 0, 2)), h_final[None]


def init_params(key, hidden_size, input_size=1):
    # PyTorch default init: U(-1/sqrt(H), 1/sqrt(H)) for RNN and for Linear(dim, 1).
    ks = jax.random.split(key, 6)
    k_rnn = 1.0 / jnp.sqrt(hidden_size)
    k_lin = 1.0 / jnp.sqrt(hidden_size)
    return {
        "w_ih": jax.random.uniform(ks[0], (hidden_size, input_size), jnp.float32, -k_rnn, k_rnn),
        "w_hh": jax.random.uniform(ks[1], (hidden_size, hidden_size), jnp.float32, -k_rnn, k_rnn),
        "b_ih": jax.random.uniform(ks[2], (hidden_size,), jnp.float32, -k_rnn, k_rnn),
        "b_hh": jax.random.uniform(ks[3], (hidden_size,), jnp.float32, -k_rnn, k_rnn),
        "w_out": jax.random.uniform(ks[4], (1, hidden_size), jnp.float32, -k_lin, k_lin),
        "b_out": jax.random.uniform(ks[5], (1,), jnp.float32, -k_lin, k_lin),
    }


if __name__ == "__main__":
    DIM = 32     # stands in for ceil(DOMAINLENGTH / DELTA_Z)
    B, T = 2, 8

    key = jax.random.PRNGKey(0)
    k_params, k_x, k_h = jax.random.split(key, 3)

    params = init_params(k_params, DIM)
    prep = prepare_params(params)                              # one-time layout prep
    x = jax.random.normal(k_x, (B, T, 1), jnp.float32)         # batch_first input
    h_state = jax.random.normal(k_h, (1, B, DIM), jnp.float32)

    outs, h_final = jax.jit(rnn_forward)(x, h_state, prep)
    jax.block_until_ready((outs, h_final))

    outs_ref, h_final_ref = rnn_reference(x, h_state, params)
    assert outs.shape == (B, T, 1) and h_final.shape == (1, B, DIM)
    assert jnp.allclose(outs, outs_ref, atol=1e-5, rtol=1e-5)
    assert jnp.allclose(h_final, h_final_ref, atol=1e-5, rtol=1e-5)

    print("KERNEL_OK")
</pallas_src>

<mosaic_0001>
module attributes {stable_mosaic.version = 11 : i64} {
  func.func @rnn_kernel(%arg0: memref<2x8xf32, #tpu.memory_space<vmem>>, %arg1: memref<2x32xf32, #tpu.memory_space<vmem>>, %arg2: memref<1x32xf32, #tpu.memory_space<vmem>>, %arg3: memref<32x32xf32, #tpu.memory_space<vmem>>, %arg4: memref<1x32xf32, #tpu.memory_space<vmem>>, %arg5: memref<32x1xf32, #tpu.memory_space<vmem>>, %arg6: memref<1xf32, #tpu.memory_space<smem>>, %arg7: memref<2x8xf32, #tpu.memory_space<vmem>>, %arg8: memref<2x32xf32, #tpu.memory_space<vmem>>) attributes {dimension_semantics = [], scalar_prefetch = 0 : i64, scratch_operands = 0 : i64, tpu.core_type = #tpu.core_type<tc>} {
    %c0 = arith.constant 0 : index
    %c0_0 = arith.constant 0 : index
    %0 = vector.load %arg2[%c0, %c0_0] : memref<1x32xf32, #tpu.memory_space<vmem>>, vector<1x32xf32>
    %c0_1 = arith.constant 0 : index
    %c0_2 = arith.constant 0 : index
    %1 = vector.load %arg3[%c0_1, %c0_2] : memref<32x32xf32, #tpu.memory_space<vmem>>, vector<32x32xf32>
    %c0_3 = arith.constant 0 : index
    %c0_4 = arith.constant 0 : index
    %2 = vector.load %arg4[%c0_3, %c0_4] : memref<1x32xf32, #tpu.memory_space<vmem>>, vector<1x32xf32>
    %c0_5 = arith.constant 0 : index
    %c0_6 = arith.constant 0 : index
    %3 = vector.load %arg5[%c0_5, %c0_6] : memref<32x1xf32, #tpu.memory_space<vmem>>, vector<32x1xf32>
    %c0_7 = arith.constant 0 : index
    %4 = memref.load %arg6[%c0_7] : memref<1xf32, #tpu.memory_space<smem>>
    %c0_8 = arith.constant 0 : index
    %c0_9 = arith.constant 0 : index
    %5 = vector.load %arg0[%c0_8, %c0_9] : memref<2x8xf32, #tpu.memory_space<vmem>>, vector<2x1xf32>
    %6 = vector.broadcast %5 : vector<2x1xf32> to vector<2x32xf32>
    %7 = vector.broadcast %0 : vector<1x32xf32> to vector<2x32xf32>
    %8 = arith.mulf %6, %7 : vector<2x32xf32>
    %9 = vector.broadcast %2 : vector<1x32xf32> to vector<2x32xf32>
    %10 = arith.addf %8, %9 : vector<2x32xf32>
    %c0_10 = arith.constant 0 : index
    %c1 = arith.constant 1 : index
    %11 = vector.load %arg0[%c0_10, %c1] : memref<2x8xf32, #tpu.memory_space<vmem>>, vector<2x1xf32>
    %12 = vector.broadcast %11 : vector<2x1xf32> to vector<2x32xf32>
    %13 = vector.broadcast %0 : vector<1x32xf32> to vector<2x32xf32>
    %14 = arith.mulf %12, %13 : vector<2x32xf32>
    %15 = vector.broadcast %2 : vector<1x32xf32> to vector<2x32xf32>
    %16 = arith.addf %14, %15 : vector<2x32xf32>
    %c0_11 = arith.constant 0 : index
    %c2 = arith.constant 2 : index
    %17 = vector.load %arg0[%c0_11, %c2] : memref<2x8xf32, #tpu.memory_space<vmem>>, vector<2x1xf32>
    %18 = vector.broadcast %17 : vector<2x1xf32> to vector<2x32xf32>
    %19 = vector.broadcast %0 : vector<1x32xf32> to vector<2x32xf32>
    %20 = arith.mulf %18, %19 : vector<2x32xf32>
    %21 = vector.broadcast %2 : vector<1x32xf32> to vector<2x32xf32>
    %22 = arith.addf %20, %21 : vector<2x32xf32>
    %c0_12 = arith.constant 0 : index
    %c3 = arith.constant 3 : index
    %23 = vector.load %arg0[%c0_12, %c3] : memref<2x8xf32, #tpu.memory_space<vmem>>, vector<2x1xf32>
    %24 = vector.broadcast %23 : vector<2x1xf32> to vector<2x32xf32>
    %25 = vector.broadcast %0 : vector<1x32xf32> to vector<2x32xf32>
    %26 = arith.mulf %24, %25 : vector<2x32xf32>
    %27 = vector.broadcast %2 : vector<1x32xf32> to vector<2x32xf32>
    %28 = arith.addf %26, %27 : vector<2x32xf32>
    %c0_13 = arith.constant 0 : index
    %c4 = arith.constant 4 : index
    %29 = vector.load %arg0[%c0_13, %c4] : memref<2x8xf32, #tpu.memory_space<vmem>>, vector<2x1xf32>
    %30 = vector.broadcast %29 : vector<2x1xf32> to vector<2x32xf32>
    %31 = vector.broadcast %0 : vector<1x32xf32> to vector<2x32xf32>
    %32 = arith.mulf %30, %31 : vector<2x32xf32>
    %33 = vector.broadcast %2 : vector<1x32xf32> to vector<2x32xf32>
    %34 = arith.addf %32, %33 : vector<2x32xf32>
    %c0_14 = arith.constant 0 : index
    %c5 = arith.constant 5 : index
    %35 = vector.load %arg0[%c0_14, %c5] : memref<2x8xf32, #tpu.memory_space<vmem>>, vector<2x1xf32>
    %36 = vector.broadcast %35 : vector<2x1xf32> to vector<2x32xf32>
    %37 = vector.broadcast %0 : vector<1x32xf32> to vector<2x32xf32>
    %38 = arith.mulf %36, %37 : vector<2x32xf32>
    %39 = vector.broadcast %2 : vector<1x32xf32> to vector<2x32xf32>
    %40 = arith.addf %38, %39 : vector<2x32xf32>
    %c0_15 = arith.constant 0 : index
    %c6 = arith.constant 6 : index
    %41 = vector.load %arg0[%c0_15, %c6] : memref<2x8xf32, #tpu.memory_space<vmem>>, vector<2x1xf32>
    %42 = vector.broadcast %41 : vector<2x1xf32> to vector<2x32xf32>
    %43 = vector.broadcast %0 : vector<1x32xf32> to vector<2x32xf32>
    %44 = arith.mulf %42, %43 : vector<2x32xf32>
    %45 = vector.broadcast %2 : vector<1x32xf32> to vector<2x32xf32>
    %46 = arith.addf %44, %45 : vector<2x32xf32>
    %c0_16 = arith.constant 0 : index
    %c7 = arith.constant 7 : index
    %47 = vector.load %arg0[%c0_16, %c7] : memref<2x8xf32, #tpu.memory_space<vmem>>, vector<2x1xf32>
    %48 = vector.broadcast %47 : vector<2x1xf32> to vector<2x32xf32>
    %49 = vector.broadcast %0 : vector<1x32xf32> to vector<2x32xf32>
    %50 = arith.mulf %48, %49 : vector<2x32xf32>
    %51 = vector.broadcast %2 : vector<1x32xf32> to vector<2x32xf32>
    %52 = arith.addf %50, %51 : vector<2x32xf32>
    %c0_17 = arith.constant 0 : index
    %c0_18 = arith.constant 0 : index
    %53 = vector.load %arg1[%c0_17, %c0_18] : memref<2x32xf32, #tpu.memory_space<vmem>>, vector<2x32xf32>
    %cst = arith.constant dense<0.000000e+00> : vector<2x32xf32>
    %54 = tpu.matmul %53, %1, %cst {dimension_numbers = #tpu.dot_dimension_numbers<[1], [0], [0], [1], [0, 0, 1, 1], [], []>} : vector<2x32xf32>, vector<32x32xf32>, vector<2x32xf32> -> vector<2x32xf32>
    %55 = arith.addf %10, %54 : vector<2x32xf32>
    %56 = math.tanh %55 : vector<2x32xf32>
    %cst_19 = arith.constant dense<0.000000e+00> : vector<2x32xf32>
    %57 = tpu.matmul %56, %1, %cst_19 {dimension_numbers = #tpu.dot_dimension_numbers<[1], [0], [0], [1], [0, 0, 1, 1], [], []>} : vector<2x32xf32>, vector<32x32xf32>, vector<2x32xf32> -> vector<2x32xf32>
    %58 = arith.addf %16, %57 : vector<2x32xf32>
    %59 = math.tanh %58 : vector<2x32xf32>
    %cst_20 = arith.constant dense<0.000000e+00> : vector<2x32xf32>
    %60 = tpu.matmul %59, %1, %cst_20 {dimension_numbers = #tpu.dot_dimension_numbers<[1], [0], [0], [1], [0, 0, 1, 1], [], []>} : vector<2x32xf32>, vector<32x32xf32>, vector<2x32xf32> -> vector<2x32xf32>
    %61 = arith.addf %22, %60 : vector<2x32xf32>
    %62 = math.tanh %61 : vector<2x32xf32>
    %cst_21 = arith.constant dense<0.000000e+00> : vector<2x32xf32>
    %63 = tpu.matmul %62, %1, %cst_21 {dimension_numbers = #tpu.dot_dimension_numbers<[1], [0], [0], [1], [0, 0, 1, 1], [], []>} : vector<2x32xf32>, vector<32x32xf32>, vector<2x32xf32> -> vector<2x32xf32>
    %64 = arith.addf %28, %63 : vector<2x32xf32>
    %65 = math.tanh %64 : vector<2x32xf32>
    %cst_22 = arith.constant dense<0.000000e+00> : vector<2x32xf32>
    %66 = tpu.matmul %65, %1, %cst_22 {dimension_numbers = #tpu.dot_dimension_numbers<[1], [0], [0], [1], [0, 0, 1, 1], [], []>} : vector<2x32xf32>, vector<32x32xf32>, vector<2x32xf32> -> vector<2x32xf32>
    %67 = arith.addf %34, %66 : vector<2x32xf32>
    %68 = math.tanh %67 : vector<2x32xf32>
    %cst_23 = arith.constant dense<0.000000e+00> : vector<2x32xf32>
    %69 = tpu.matmul %68, %1, %cst_23 {dimension_numbers = #tpu.dot_dimension_numbers<[1], [0], [0], [1], [0, 0, 1, 1], [], []>} : vector<2x32xf32>, vector<32x32xf32>, vector<2x32xf32> -> vector<2x32xf32>
    %70 = arith.addf %40, %69 : vector<2x32xf32>
    %71 = math.tanh %70 : vector<2x32xf32>
    %cst_24 = arith.constant dense<0.000000e+00> : vector<2x32xf32>
    %72 = tpu.matmul %71, %1, %cst_24 {dimension_numbers = #tpu.dot_dimension_numbers<[1], [0], [0], [1], [0, 0, 1, 1], [], []>} : vector<2x32xf32>, vector<32x32xf32>, vector<2x32xf32> -> vector<2x32xf32>
    %73 = arith.addf %46, %72 : vector<2x32xf32>
    %74 = math.tanh %73 : vector<2x32xf32>
    %cst_25 = arith.constant dense<0.000000e+00> : vector<2x32xf32>
    %75 = tpu.matmul %74, %1, %cst_25 {dimension_numbers = #tpu.dot_dimension_numbers<[1], [0], [0], [1], [0, 0, 1, 1], [], []>} : vector<2x32xf32>, vector<32x32xf32>, vector<2x32xf32> -> vector<2x32xf32>
    %76 = arith.addf %52, %75 : vector<2x32xf32>
    %77 = math.tanh %76 : vector<2x32xf32>
    %c0_26 = arith.constant 0 : index
    %c0_27 = arith.constant 0 : index
    %78 = vector.load %arg8[%c0_26, %c0_27] : memref<2x32xf32, #tpu.memory_space<vmem>>, vector<2x32xf32>
    tpu.vector_store %arg8[%c0_26, %c0_27], %77 {strides = array<i32>} : memref<2x32xf32, #tpu.memory_space<vmem>>, vector<2x32xf32>,
    %79 = tpu.concatenate %56, %59, %62, %65, %68, %71, %74, %77 in 0 : vector<2x32xf32>, vector<2x32xf32>, vector<2x32xf32>, vector<2x32xf32>, vector<2x32xf32>, vector<2x32xf32>, vector<2x32xf32>, vector<2x32xf32> -> vector<16x32xf32>
    %cst_28 = arith.constant dense<0.000000e+00> : vector<16x1xf32>
    %80 = tpu.matmul %79, %3, %cst_28 {dimension_numbers = #tpu.dot_dimension_numbers<[1], [0], [0], [1], [0, 0, 1, 1], [], []>} : vector<16x32xf32>, vector<32x1xf32>, vector<16x1xf32> -> vector<16x1xf32>
    %81 = vector.extract_strided_slice %80 {offsets = [0, 0], sizes = [2, 1], strides = [1, 1]} : vector<16x1xf32> to vector<2x1xf32>
    %82 = vector.extract_strided_slice %80 {offsets = [2, 0], sizes = [2, 1], strides = [1, 1]} : vector<16x1xf32> to vector<2x1xf32>
    %83 = vector.extract_strided_slice %80 {offsets = [4, 0], sizes = [2, 1], strides = [1, 1]} : vector<16x1xf32> to vector<2x1xf32>
    %84 = vector.extract_strided_slice %80 {offsets = [6, 0], sizes = [2, 1], strides = [1, 1]} : vector<16x1xf32> to vector<2x1xf32>
    %85 = vector.extract_strided_slice %80 {offsets = [8, 0], sizes = [2, 1], strides = [1, 1]} : vector<16x1xf32> to vector<2x1xf32>
    %86 = vector.extract_strided_slice %80 {offsets = [10, 0], sizes = [2, 1], strides = [1, 1]} : vector<16x1xf32> to vector<2x1xf32>
    %87 = vector.extract_strided_slice %80 {offsets = [12, 0], sizes = [2, 1], strides = [1, 1]} : vector<16x1xf32> to vector<2x1xf32>
    %88 = vector.extract_strided_slice %80 {offsets = [14, 0], sizes = [2, 1], strides = [1, 1]} : vector<16x1xf32> to vector<2x1xf32>
    %89 = tpu.concatenate %81, %82, %83, %84, %85, %86, %87, %88 in 1 : vector<2x1xf32>, vector<2x1xf32>, vector<2x1xf32>, vector<2x1xf32>, vector<2x1xf32>, vector<2x1xf32>, vector<2x1xf32>, vector<2x1xf32> -> vector<2x8xf32>
    %90 = vector.broadcast %4 : f32 to vector<2x8xf32>
    %91 = arith.addf %89, %90 : vector<2x8xf32>
    %c0_29 = arith.constant 0 : index
    %c0_30 = arith.constant 0 : index
    %92 = vector.load %arg7[%c0_29, %c0_30] : memref<2x8xf32, #tpu.memory_space<vmem>>, vector<2x8xf32>
    tpu.vector_store %arg7[%c0_29, %c0_30], %91 {strides = array<i32>} : memref<2x8xf32, #tpu.memory_space<vmem>>, vector<2x8xf32>,
    return
  }
}

</mosaic_0001>

<llo_original>
// kernel: rnn_forward.1
$region0: #{rnn_forward.1}
  #allocation0 [shape = 'u32[]', space=smem, size = 0x4, offset = 0x4, fixed_abs, tag = 'smem constant byte address 0x4 - core index']
  #allocation1 [shape = 'u32[72,128]{1,0:T(1,128)}', space=vmem, size = 0x9000, scoped, tag = 'internal scratch']
  #allocation2 [shape = 'f32[1]{0:T(128)S(6)}', space=smem, size = 0x200, scoped, tag = 'scoped memory for rnn_forward.1']
  %s0 = inlined_call_operand.vmem [shape: f32[2,8], index: 0, kind: input, shape index: {}]
  %s1 = inlined_call_operand.vmem [shape: f32[2,32], index: 1, kind: input, shape index: {}, may-alias: {1,8}]
  %s2 = inlined_call_operand.vmem [shape: f32[1,32], index: 2, kind: input, shape index: {}]
  %s3 = inlined_call_operand.hbm [shape: f32[32,32], index: 3, kind: input, shape index: {}]
  %s4 = inlined_call_operand.vmem [shape: f32[1,32], index: 4, kind: input, shape index: {}]
  %s5 = inlined_call_operand.vmem [shape: f32[32,1], index: 5, kind: input, shape index: {}]
  %s6 = inlined_call_operand.<no memory space> [shape: f32[1], index: 6, kind: input, shape index: {}]
  %s7 = inlined_call_operand.hbm [shape: f32[2,8], index: 7, kind: output, shape index: {0}]
  %s8 = inlined_call_operand.vmem [shape: f32[2,32], index: 8, kind: output, shape index: {1}, may-alias: {1,8}]
  %9 = xla_tuple %s7, %s8
  %s10 = sld [smem:[#allocation0]]
  $region50: #{rnn_forward.1} parent=0
    _
  %s12 = ssub.s32 1, %s10
  %s13 = scalar_select 0, %s12, %s10
  %14 = sst [smem:[#allocation2]] %s6
  $region1: #{rnn_forward.1} parent=0
    #allocation3 [shape = 'u8[16384]{0}', space=vmem, size = 0x4000, scoped, tag = 'input window, operand 3, single buffered']
    #allocation4 [shape = 's32[1]{0}', space=sflag, size = 0x4, scoped, tag = 'scoped memory for rnn_forward.1']
    #allocation5 [shape = 's32[1]{0}', space=sflag, size = 0x4, scoped, tag = 'scoped memory for rnn_forward.1']
    #allocation6 [shape = 'u8[1024]{0}', space=vmem, size = 0x400, scoped, tag = 'output window, operand 0, single buffered']
    %15 = vsyncpa [#allocation4], 0
    %16 = vsyncpa [#allocation5], 0
    // Predicated region
    $region2: #{rnn_forward.1} parent=1 // pred_check
      _
    $region3: #{rnn_forward.1} parent=1 // pred_check_branch
      %18 = sbr.rel (0) target = $region5
    $region4: #{rnn_forward.1} parent=1 // pred_region
      _
    $region5: #{rnn_forward.1} parent=1 // pred_fallthru
      _
    // Predicated region
    $region6: #{rnn_forward.1} parent=1 // pred_check
      _
    $region7: #{rnn_forward.1} parent=1 // pred_check_branch
      %20 = sbr.rel (0) target = $region9
    $region8: #{rnn_forward.1} parent=1 // pred_region
      _
    $region9: #{rnn_forward.1} parent=1 // pred_fallthru
      _
    // Predicated region
    $region10: #{rnn_forward.1} parent=1 // pred_check
      _
    $region11: #{rnn_forward.1} parent=1 // pred_check_branch
      %22 = sbr.rel (0) target = $region13
    $region12: #{rnn_forward.1} parent=1 // pred_region
      _
    $region13: #{rnn_forward.1} parent=1 // pred_fallthru
      _
    // Predicated region
    $region14: #{rnn_forward.1} parent=1 // pred_check
      _
    $region15: #{rnn_forward.1} parent=1 // pred_check_branch
      %24 = sbr.rel (0) target = $region17
    $region16: #{rnn_forward.1} parent=1 // pred_region
      %26 = vsyncadd [#allocation4], 0
      %s27 = sshll.u32 %s3, 4
      %s28 = int_to_ptr.hbm [resolvable:$true] %s27
      %s29 = sshll.u32 [#allocation3], 4
      %s30 = int_to_ptr.vmem [resolvable:$true] %s29
      %35 = dma.hbm_to_vmem [thread:$0]  %s28, 512, %s30, [#allocation4], 128, 128, 8
    $region17: #{rnn_forward.1} parent=1 // pred_fallthru
      _
    // Predicated region
    $region18: #{rnn_forward.1} parent=1 // pred_check
      _
    $region19: #{rnn_forward.1} parent=1 // pred_check_branch
      %37 = sbr.rel (0) target = $region21
    $region20: #{rnn_forward.1} parent=1 // pred_region
      _
    $region21: #{rnn_forward.1} parent=1 // pred_fallthru
      _
    // Predicated region
    $region22: #{rnn_forward.1} parent=1 // pred_check
      _
    $region23: #{rnn_forward.1} parent=1 // pred_check_branch
      %39 = sbr.rel (0) target = $region25
    $region24: #{rnn_forward.1} parent=1 // pred_region
      _
    $region25: #{rnn_forward.1} parent=1 // pred_fallthru
      _
    // Predicated region
    $region26: #{rnn_forward.1} parent=1 // pred_check
      _
    $region27: #{rnn_forward.1} parent=1 // pred_check_branch
      %41 = sbr.rel (0) target = $region29
    $region28: #{rnn_forward.1} parent=1 // pred_region
      _
    $region29: #{rnn_forward.1} parent=1 // pred_fallthru
      _
    // Predicated region
    $region30: #{rnn_forward.1} parent=1 // pred_check
      _
    $region31: #{rnn_forward.1} parent=1 // pred_check_branch
      %43 = sbr.rel (0) target = $region33
    $region32: #{rnn_forward.1} parent=1 // pred_region
      %45 = dma.done [#allocation4], 512
    $region33: #{rnn_forward.1} parent=1 // pred_fallthru
      _
    %v46 = vld [vmem:[%s2] sm:$0x1]
    %v47 = vld [vmem:[#allocation3] sm:$0xff]
    %v48 = vld [vmem:[#allocation3 + $0x8] sm:$0xff]
    %v49 = vld [vmem:[#allocation3 + $0x10] sm:$0xff]
    %v50 = vld [vmem:[#allocation3 + $0x18] sm:$0xff]
    %v51 = vld [vmem:[%s4] sm:$0x1]
    %v52 = vld [vmem:[%s5] sm:$0xff]
    %v53 = vld [vmem:[%s5 + $0x8] sm:$0xff]
    %v54 = vld [vmem:[%s5 + $0x10] sm:$0xff]
    %v55 = vld [vmem:[%s5 + $0x18] sm:$0xff]
    %s56 = sld [smem:[#allocation2]]
    %v57 = vld [vmem:[%s0] sm:$0x3]
    %59 = vset.pattern.permute.xlu0 0
    %60 = vperm.xlu0 %59, %v57
    %v61 = vpop.permute.xlu0 %60
    %v64 = vperm.slane %v46, 0
    %v66 = vmul.f32 %v61, %v64
    %v68 = vperm.slane %v51, 0
    %v70 = vadd.f32 %v66, %v68
    %71 = vset.pattern.permute.xlu0 1
    %72 = vperm.xlu0 %71, %v57
    %v73 = vpop.permute.xlu0 %72
    %v75 = vmul.f32 %v73, %v64
    %v76 = vadd.f32 %v75, %v68
    %77 = vset.pattern.permute.xlu0 2
    %78 = vperm.xlu0 %77, %v57
    %v79 = vpop.permute.xlu0 %78
    %v81 = vmul.f32 %v79, %v64
    %v82 = vadd.f32 %v81, %v68
    %83 = vset.pattern.permute.xlu0 3
    %84 = vperm.xlu0 %83, %v57
    %v85 = vpop.permute.xlu0 %84
    %v87 = vmul.f32 %v85, %v64
    %v88 = vadd.f32 %v87, %v68
    %89 = vset.pattern.permute.xlu0 4
    %90 = vperm.xlu0 %89, %v57
    %v91 = vpop.permute.xlu0 %90
    %v93 = vmul.f32 %v91, %v64
    %v94 = vadd.f32 %v93, %v68
    %95 = vset.pattern.permute.xlu0 5
    %96 = vperm.xlu0 %95, %v57
    %v97 = vpop.permute.xlu0 %96
    %v99 = vmul.f32 %v97, %v64
    %v100 = vadd.f32 %v99, %v68
    %101 = vset.pattern.permute.xlu0 6
    %102 = vperm.xlu0 %101, %v57
    %v103 = vpop.permute.xlu0 %102
    %v105 = vmul.f32 %v103, %v64
    %v106 = vadd.f32 %v105, %v68
    %107 = vset.pattern.permute.xlu0 7
    %108 = vperm.xlu0 %107, %v57
    %v109 = vpop.permute.xlu0 %108
    %v111 = vmul.f32 %v109, %v64
    %v112 = vadd.f32 %v111, %v68
    %v113 = vld [vmem:[%s1] sm:$0x3]
    %vm114 = vcmask 261120
    %v116 = vsel %vm114, %v113, 0
    %118 = vmatpush.msra.mxu0 0.0
    %119 = vmatpush.msra.mxu0 0.0
    %120 = vmatpush.msra.mxu0 0.0
    %121 = vmatpush.msra.mxu0 0.0
    %122 = vmatpush.msra.mxu0 0.0
    %123 = vmatpush.msra.mxu0 0.0
    %124 = vmatpush.msra.mxu0 0.0
    %125 = vmatpush.msra.mxu0 0.0
    %126 = vmatpush.msra.mxu0 0.0
    %127 = vmatpush.msra.mxu0 0.0
    %128 = vmatpush.msra.mxu0 0.0
    %129 = vmatpush.msra.mxu0 0.0
    %130 = vmatpush.msra.mxu0 %v50
    %131 = vmatpush.msra.mxu0 %v49
    %132 = vmatpush.msra.mxu0 %v48
    %133 = vmatpush.msra.mxu0 %v47
    %134 = vmatmul.f32.gmra.mxu0 %v116
    %v135 = vpop.f32.mrf.mxu0
    %v136 = vadd.f32 0.0, %v135
    %137 = vdwg.mxu0
    %v138 = vadd.f32 %v70, %v136
    %v139 = vtanh.pop %v138
    %v141 = vsel %vm114, %v139, 0
    %143 = vmatpush.msra.mxu0 0.0
    %144 = vmatpush.msra.mxu0 0.0
    %145 = vmatpush.msra.mxu0 0.0
    %146 = vmatpush.msra.mxu0 0.0
    %147 = vmatpush.msra.mxu0 0.0
    %148 = vmatpush.msra.mxu0 0.0
    %149 = vmatpush.msra.mxu0 0.0
    %150 = vmatpush.msra.mxu0 0.0
    %151 = vmatpush.msra.mxu0 0.0
    %152 = vmatpush.msra.mxu0 0.0
    %153 = vmatpush.msra.mxu0 0.0
    %154 = vmatpush.msra.mxu0 0.0
    %155 = vmatpush.msra.mxu0 %v50
    %156 = vmatpush.msra.mxu0 %v49
    %157 = vmatpush.msra.mxu0 %v48
    %158 = vmatpush.msra.mxu0 %v47
    %159 = vmatmul.f32.gmra.mxu0 %v141
    %v160 = vpop.f32.mrf.mxu0
    %v161 = vadd.f32 0.0, %v160
    %162 = vdwg.mxu0
    %v163 = vadd.f32 %v76, %v161
    %v164 = vtanh.pop %v163
    %v166 = vsel %vm114, %v164, 0
    %168 = vmatpush.msra.mxu0 0.0
    %169 = vmatpush.msra.mxu0 0.0
    %170 = vmatpush.msra.mxu0 0.0
    %171 = vmatpush.msra.mxu0 0.0
    %172 = vmatpush.msra.mxu0 0.0
    %173 = vmatpush.msra.mxu0 0.0
    %174 = vmatpush.msra.mxu0 0.0
    %175 = vmatpush.msra.mxu0 0.0
    %176 = vmatpush.msra.mxu0 0.0
    %177 = vmatpush.msra.mxu0 0.0
    %178 = vmatpush.msra.mxu0 0.0
    %179 = vmatpush.msra.mxu0 0.0
    %180 = vmatpush.msra.mxu0 %v50
    %181 = vmatpush.msra.mxu0 %v49
    %182 = vmatpush.msra.mxu0 %v48
    %183 = vmatpush.msra.mxu0 %v47
    %184 = vmatmul.f32.gmra.mxu0 %v166
    %v185 = vpop.f32.mrf.mxu0
    %v186 = vadd.f32 0.0, %v185
    %187 = vdwg.mxu0
    %v188 = vadd.f32 %v82, %v186
    %v189 = vtanh.pop %v188
    %v191 = vsel %vm114, %v189, 0
    %193 = vmatpush.msra.mxu0 0.0
    %194 = vmatpush.msra.mxu0 0.0
    %195 = vmatpush.msra.mxu0 0.0
    %196 = vmatpush.msra.mxu0 0.0
    %197 = vmatpush.msra.mxu0 0.0
    %198 = vmatpush.msra.mxu0 0.0
    %199 = vmatpush.msra.mxu0 0.0
    %200 = vmatpush.msra.mxu0 0.0
    %201 = vmatpush.msra.mxu0 0.0
    %202 = vmatpush.msra.mxu0 0.0
    %203 = vmatpush.msra.mxu0 0.0
    %204 = vmatpush.msra.mxu0 0.0
    %205 = vmatpush.msra.mxu0 %v50
    %206 = vmatpush.msra.mxu0 %v49
    %207 = vmatpush.msra.mxu0 %v48
    %208 = vmatpush.msra.mxu0 %v47
    %209 = vmatmul.f32.gmra.mxu0 %v191
    %v210 = vpop.f32.mrf.mxu0
    %v211 = vadd.f32 0.0, %v210
    %212 = vdwg.mxu0
    %v213 = vadd.f32 %v88, %v211
    %v214 = vtanh.pop %v213
    %v216 = vsel %vm114, %v214, 0
    %218 = vmatpush.msra.mxu0 0.0
    %219 = vmatpush.msra.mxu0 0.0
    %220 = vmatpush.msra.mxu0 0.0
    %221 = vmatpush.msra.mxu0 0.0
    %222 = vmatpush.msra.mxu0 0.0
    %223 = vmatpush.msra.mxu0 0.0
    %224 = vmatpush.msra.mxu0 0.0
    %225 = vmatpush.msra.mxu0 0.0
    %226 = vmatpush.msra.mxu0 0.0
    %227 = vmatpush.msra.mxu0 0.0
    %228 = vmatpush.msra.mxu0 0.0
    %229 = vmatpush.msra.mxu0 0.0
    %230 = vmatpush.msra.mxu0 %v50
    %231 = vmatpush.msra.mxu0 %v49
    %232 = vmatpush.msra.mxu0 %v48
    %233 = vmatpush.msra.mxu0 %v47
    %234 = vmatmul.f32.gmra.mxu0 %v216
    %v235 = vpop.f32.mrf.mxu0
    %v236 = vadd.f32 0.0, %v235
    %237 = vdwg.mxu0
    %v238 = vadd.f32 %v94, %v236
    %v239 = vtanh.pop %v238
    %v241 = vsel %vm114, %v239, 0
    %243 = vmatpush.msra.mxu0 0.0
    %244 = vmatpush.msra.mxu0 0.0
    %245 = vmatpush.msra.mxu0 0.0
    %246 = vmatpush.msra.mxu0 0.0
    %247 = vmatpush.msra.mxu0 0.0
    %248 = vmatpush.msra.mxu0 0.0
    %249 = vmatpush.msra.mxu0 0.0
    %250 = vmatpush.msra.mxu0 0.0
    %251 = vmatpush.msra.mxu0 0.0
    %252 = vmatpush.msra.mxu0 0.0
    %253 = vmatpush.msra.mxu0 0.0
    %254 = vmatpush.msra.mxu0 0.0
    %255 = vmatpush.msra.mxu0 %v50
    %256 = vmatpush.msra.mxu0 %v49
    %257 = vmatpush.msra.mxu0 %v48
    %258 = vmatpush.msra.mxu0 %v47
    %259 = vmatmul.f32.gmra.mxu0 %v241
    %v260 = vpop.f32.mrf.mxu0
    %v261 = vadd.f32 0.0, %v260
    %262 = vdwg.mxu0
    %v263 = vadd.f32 %v100, %v261
    %v264 = vtanh.pop %v263
    %v266 = vsel %vm114, %v264, 0
    %268 = vmatpush.msra.mxu0 0.0
    %269 = vmatpush.msra.mxu0 0.0
    %270 = vmatpush.msra.mxu0 0.0
    %271 = vmatpush.msra.mxu0 0.0
    %272 = vmatpush.msra.mxu0 0.0
    %273 = vmatpush.msra.mxu0 0.0
    %274 = vmatpush.msra.mxu0 0.0
    %275 = vmatpush.msra.mxu0 0.0
    %276 = vmatpush.msra.mxu0 0.0
    %277 = vmatpush.msra.mxu0 0.0
    %278 = vmatpush.msra.mxu0 0.0
    %279 = vmatpush.msra.mxu0 0.0
    %280 = vmatpush.msra.mxu0 %v50
    %281 = vmatpush.msra.mxu0 %v49
    %282 = vmatpush.msra.mxu0 %v48
    %283 = vmatpush.msra.mxu0 %v47
    %284 = vmatmul.f32.gmra.mxu0 %v266
    %v285 = vpop.f32.mrf.mxu0
    %v286 = vadd.f32 0.0, %v285
    %287 = vdwg.mxu0
    %v288 = vadd.f32 %v106, %v286
    %v289 = vtanh.pop %v288
    %v291 = vsel %vm114, %v289, 0
    %293 = vmatpush.msra.mxu0 0.0
    %294 = vmatpush.msra.mxu0 0.0
    %295 = vmatpush.msra.mxu0 0.0
    %296 = vmatpush.msra.mxu0 0.0
    %297 = vmatpush.msra.mxu0 0.0
    %298 = vmatpush.msra.mxu0 0.0
    %299 = vmatpush.msra.mxu0 0.0
    %300 = vmatpush.msra.mxu0 0.0
    %301 = vmatpush.msra.mxu0 0.0
    %302 = vmatpush.msra.mxu0 0.0
    %303 = vmatpush.msra.mxu0 0.0
    %304 = vmatpush.msra.mxu0 0.0
    %305 = vmatpush.msra.mxu0 %v50
    %306 = vmatpush.msra.mxu0 %v49
    %307 = vmatpush.msra.mxu0 %v48
    %308 = vmatpush.msra.mxu0 %v47
    %309 = vmatmul.f32.gmra.mxu0 %v291
    %v310 = vpop.f32.mrf.mxu0
    %v311 = vadd.f32 0.0, %v310
    %312 = vdwg.mxu0
    %v313 = vadd.f32 %v112, %v311
    %v314 = vtanh.pop %v313
    %vm315 = vcmask 254976
    %316 = vst.msk [vmem:[%s8] sm:$0x3] %vm315, %v314
    %v317 = vrot.slane %v164, 6
    %v319 = vrot.slane %v189, 4
    %v321 = vrot.slane %v214, 2
    %v323 = vrot.slane %v264, 6
    %v325 = vrot.slane %v289, 4
    %v328 = vrot.slane %v314, 2
    %vm330 = vcmask 1041408
    %v331 = vsel %vm330, %v139, %v317
    %vm332 = vcmask 1043456
    %v333 = vsel %vm332, %v331, %v319
    %vm334 = vcmask 1045504
    %v335 = vsel %vm334, %v333, %v321
    %v336 = vsel %vm330, %v239, %v323
    %v337 = vsel %vm332, %v336, %v325
    %v338 = vsel %vm334, %v337, %v328
    %v340 = vsel %vm114, %v335, 0
    %v343 = vsel %vm114, %v338, 0
    %345 = vmatpush.msra.mxu0 0.0
    %346 = vmatpush.msra.mxu0 0.0
    %347 = vmatpush.msra.mxu0 0.0
    %348 = vmatpush.msra.mxu0 0.0
    %349 = vmatpush.msra.mxu0 0.0
    %350 = vmatpush.msra.mxu0 0.0
    %351 = vmatpush.msra.mxu0 0.0
    %352 = vmatpush.msra.mxu0 0.0
    %353 = vmatpush.msra.mxu0 0.0
    %354 = vmatpush.msra.mxu0 0.0
    %355 = vmatpush.msra.mxu0 0.0
    %356 = vmatpush.msra.mxu0 0.0
    %357 = vmatpush.msra.mxu0 %v55
    %358 = vmatpush.msra.mxu0 %v54
    %359 = vmatpush.msra.mxu0 %v53
    %360 = vmatpush.msra.mxu0 %v52
    %361 = vmatmul.f32.gmra.mxu0 %v340
    %v362 = vpop.f32.mrf.mxu0
    %v363 = vadd.f32 0.0, %v362
    %364 = vmatmul.f32.gmra.mxu0 %v343
    %v365 = vpop.f32.mrf.mxu0
    %v366 = vadd.f32 0.0, %v365
    %367 = vdwg.mxu0
    %v369 = vrot.slane %v363, 2
    %370 = vrot.lane.b32.xlu0 %v369, 1
    %v371 = vpop.permute.xlu0 %370
    %v373 = vrot.slane %v363, 4
    %374 = vrot.lane.b32.xlu0 %v373, 2
    %v375 = vpop.permute.xlu0 %374
    %v377 = vrot.slane %v363, 6
    %378 = vrot.lane.b32.xlu0 %v377, 3
    %v379 = vpop.permute.xlu0 %378
    %382 = vrot.lane.b32.xlu0 %v366, 4
    %v383 = vpop.permute.xlu0 %382
    %v385 = vrot.slane %v366, 2
    %386 = vrot.lane.b32.xlu0 %v385, 5
    %v387 = vpop.permute.xlu0 %386
    %v389 = vrot.slane %v366, 4
    %390 = vrot.lane.b32.xlu0 %v389, 6
    %v391 = vpop.permute.xlu0 %390
    %v393 = vrot.slane %v366, 6
    %394 = vrot.lane.b32.xlu0 %v393, 7
    %v395 = vpop.permute.xlu0 %394
    %vm397 = vcmask 7168
    %v398 = vsel %vm397, %v363, %v371
    %vm399 = vcmask 15360
    %v400 = vsel %vm399, %v398, %v375
    %vm401 = vcmask 23552
    %v402 = vsel %vm401, %v400, %v379
    %vm403 = vcmask 31744
    %v404 = vsel %vm403, %v402, %v383
    %vm405 = vcmask 39936
    %v406 = vsel %vm405, %v404, %v387
    %vm407 = vcmask 48128
    %v408 = vsel %vm407, %v406, %v391
    %vm409 = vcmask 56320
    %v410 = vsel %vm409, %v408, %v395
    %v411 = vstv %s56
    %v412 = vadd.f32 %v410, %v411
    %vm413 = vcmask 58368
    %414 = vst.msk [vmem:[#allocation6] sm:$0x3] %vm413, %v412
    // Predicated region
    $region34: #{rnn_forward.1} parent=1 // pred_check
      _
    $region35: #{rnn_forward.1} parent=1 // pred_check_branch
      %416 = sbr.rel (0) target = $region37
    $region36: #{rnn_forward.1} parent=1 // pred_region
      %418 = vsyncadd [#allocation5], 0
      %s420 = sshll.u32 [#allocation6], 4
      %s421 = int_to_ptr.vmem [resolvable:$true] %s420
      %s422 = sshll.u32 %s7, 4
      %s423 = int_to_ptr.hbm [resolvable:$true] %s422
      %425 = dma.vmem_to_hbm [thread:$0]  %s421, 32, %s423, [#allocation5]
    $region37: #{rnn_forward.1} parent=1 // pred_fallthru
      _
    // Predicated region
    $region38: #{rnn_forward.1} parent=1 // pred_check
      _
    $region39: #{rnn_forward.1} parent=1 // pred_check_branch
      %427 = sbr.rel (0) target = $region41
    $region40: #{rnn_forward.1} parent=1 // pred_region
      _
    $region41: #{rnn_forward.1} parent=1 // pred_fallthru
      _
    // Predicated region
    $region42: #{rnn_forward.1} parent=1 // pred_check
      _
    $region43: #{rnn_forward.1} parent=1 // pred_check_branch
      %429 = sbr.rel (0) target = $region45
    $region44: #{rnn_forward.1} parent=1 // pred_region
      %431 = dma.done [#allocation5], 32
    $region45: #{rnn_forward.1} parent=1 // pred_fallthru
      _
    // Predicated region
    $region46: #{rnn_forward.1} parent=1 // pred_check
      _
    $region47: #{rnn_forward.1} parent=1 // pred_check_branch
      %433 = sbr.rel (0) target = $region49
    $region48: #{rnn_forward.1} parent=1 // pred_region
      _
    $region49: #{rnn_forward.1} parent=1 // pred_fallthru
      _
    %434 = vsyncpa [#allocation4], 1
    %435 = vsyncpa [#allocation5], 1

</llo_original>
